<compile_context>
chip_gen: v7x
topology: tpu7x:2x2x1
jax: 0.10.0
libtpu: 0.0.40
codegen_flags: <defaults>
</compile_context>

<pallas_src>
import math

import jax
import jax.numpy as jnp
from jax.experimental import pallas as pl
from jax.experimental.pallas import tpu as pltpu


_SMALL_PROBLEM_ELEMENTS = 65536          # below this, fused XLA broadcast-mul wins
_PER_TILE_BUDGET_BYTES = 4 * 1024 * 1024  # ~4 MiB/tile -> ~16 MiB double-buffered footprint
_MAX_LANE_WIDTH = 2048                    # widest folded last dim we present
_VMEM_LIMIT_BYTES = 32 * 1024 * 1024      # > footprint; raises v5e 16 MiB default,
                                          # = v6e/v7x scoped default, << v7x 64 MiB phys


def _prompt_mul_kernel(w_ref, x_ref, o_ref):
    # w_ref: (1, W) resident weight block; x_ref / o_ref: (TN, W) row tiles.
    # One VPU broadcast-mul per vreg; the kernel is purely HBM-bandwidth bound.
    o_ref[...] = (x_ref[...] * w_ref[...]).astype(o_ref.dtype)


def _round_up(x: int, m: int) -> int:
    return ((x + m - 1) // m) * m


def _choose_lane_width(n: int, h: int, max_width: int = _MAX_LANE_WIDTH):
    """Widest W (multiple of lcm(h, 128), <= max_width) that exactly divides n*h.

    Re-viewing the flat (n*h,) stream as (-1, W) keeps stores lane-dense and
    unmasked for any H whose lcm with 128 is small.  Returns None when no
    exact fold exists (caller keeps the natural (n, h) layout)."""
    base = (h * 128) // math.gcd(h, 128)  # lcm(h, 128)
    if base > max_width:
        return None
    total = n * h
    for k in range(max_width // base, 0, -1):
        w = k * base
        if total % w == 0:
            return w
    return None


def _choose_tile_rows(rows: int, width: int, itemsize: int) -> int:
    sublane = {4: 8, 2: 16, 1: 32}.get(itemsize, 8)
    if rows <= sublane:
        return rows                       # single block == full leading dim (legal)
    tn = (_PER_TILE_BUDGET_BYTES // max(1, width * itemsize)) // sublane * sublane
    tn = max(sublane, min(tn, _round_up(rows, sublane)))
    if tn >= rows:
        # Would collapse to a single grid step; split so v7x's second
        # TensorCore gets work (neutral on v5e/v6e: one extra ~0.35 us step).
        tn = _round_up(pl.cdiv(rows, 2), sublane)
    return tn


def _prompt_mul_tiled(w: jax.Array, x: jax.Array) -> jax.Array:
    """Core tiled pallas_call. w: (1, W); x: (rows, W) -> (rows, W)."""
    rows, width = x.shape
    itemsize = jnp.dtype(x.dtype).itemsize
    tn = _choose_tile_rows(rows, width, itemsize)
    grid = (pl.cdiv(rows, tn),)           # ragged last block masked by Pallas: no pad/slice

    return pl.pallas_call(
        _prompt_mul_kernel,
        out_shape=jax.ShapeDtypeStruct((rows, width), x.dtype),
        grid=grid,
        in_specs=[
            pl.BlockSpec((1, width), lambda i: (0, 0)),    # tiny resident weight
            pl.BlockSpec((tn, width), lambda i: (i, 0)),   # embedding row tile
        ],
        out_specs=pl.BlockSpec((tn, width), lambda i: (i, 0)),
        cost_estimate=pl.CostEstimate(
            flops=rows * width,
            transcendentals=0,
            bytes_accessed=(2 * rows * width + width) * itemsize,
        ),
        compiler_params=pltpu.CompilerParams(
            dimension_semantics=("parallel",),             # independent row tiles
            vmem_limit_bytes=_VMEM_LIMIT_BYTES,
        ),
    )(w, x)


def downstream_prompt(weight: jax.Array, graph_embedding: jax.Array,
                      *, force_pallas: bool = False) -> jax.Array:
    """downstreamprompt.forward: weight (1, H) * graph_embedding (N, H) -> (N, H)."""
    n, h = graph_embedding.shape
    assert weight.shape == (1, h)
    w = weight.astype(graph_embedding.dtype)   # no silent f32 promotion in-kernel

    # TODO(synk): in a real model this (1, H) scale should be fused into the
    # producing/consuming op's epilogue; a standalone kernel is irreducibly
    # 2*N*H bytes of HBM traffic.
    if (n * h < _SMALL_PROBLEM_ELEMENTS) and not force_pallas:
        return w * graph_embedding

    x = graph_embedding
    width = _choose_lane_width(n, h)
    if width is not None and width != h:
        x = x.reshape(-1, width)               # free row-major re-view of the flat stream
        w = jnp.tile(w, (1, width // h))       # weight has period h; semantics exact

    out = _prompt_mul_tiled(w, x)
    if out.shape != (n, h):
        out = out.reshape(n, h)
    return out


if __name__ == "__main__":
    key = jax.random.PRNGKey(0)
    k1, k2, k3, k4, k5 = jax.random.split(key, 5)

    # Case 1: module-scale shape (hid_units=32, 8 rows), weight = ones as in
    # reset_parameters(); forced through the kernel -> lane-dense fold to W=256.
    hid1, n1 = 32, 8
    w1 = jnp.ones((1, hid1), dtype=jnp.float32)
    x1 = jax.random.normal(k1, (n1, hid1), dtype=jnp.float32)
    o1 = jax.block_until_ready(downstream_prompt(w1, x1, force_pallas=True))
    assert o1.shape == (n1, hid1)
    assert jnp.allclose(o1, w1 * x1, atol=1e-6), "mismatch (H=32 fold case)"

    # Case 2: natural Pallas path (>= small-problem threshold), non-trivial weight,
    # folded last dim 2048 and a 2-step row grid.
    hid2, n2 = 128, 1024
    w2 = jax.random.normal(k2, (1, hid2), dtype=jnp.float32)
    x2 = jax.random.normal(k3, (n2, hid2), dtype=jnp.float32)
    o2 = jax.block_until_ready(downstream_prompt(w2, x2))
    assert o2.shape == (n2, hid2)
    assert jnp.allclose(o2, w2 * x2, atol=1e-6), "mismatch (H=128 tiled case)"

    # Case 3: H neither divides nor is a multiple of 128 -> lcm fold (W=1920).
    hid3, n3 = 96, 100
    w3 = jax.random.normal(k4, (1, hid3), dtype=jnp.float32)
    x3 = jax.random.normal(k5, (n3, hid3), dtype=jnp.float32)
    o3 = jax.block_until_ready(downstream_prompt(w3, x3, force_pallas=True))
    assert o3.shape == (n3, hid3)
    assert jnp.allclose(o3, w3 * x3, atol=1e-6), "mismatch (H=96 lcm-fold case)"

    # Case 4: no exact fold (lcm(200,128)=3200 > cap) -> natural (N, H) layout,
    # ragged 2-step grid; still exact.
    hid4, n4 = 200, 16
    w4 = jax.random.normal(k1, (1, hid4), dtype=jnp.float32)
    x4 = jax.random.normal(k2, (n4, hid4), dtype=jnp.float32)
    o4 = jax.block_until_ready(downstream_prompt(w4, x4, force_pallas=True))
    assert o4.shape == (n4, hid4)
    assert jnp.allclose(o4, w4 * x4, atol=1e-6), "mismatch (H=200 fallback case)"

    print("KERNEL_OK")
</pallas_src>

<mosaic_0001>
module attributes {stable_mosaic.version = 11 : i64} {
  func.func @_prompt_mul_kernel(%arg0: i32, %arg1: memref<1x256xf32, #tpu.memory_space<vmem>>, %arg2: memref<1x256xf32, #tpu.memory_space<vmem>>, %arg3: memref<1x256xf32, #tpu.memory_space<vmem>>) attributes {dimension_semantics = [#tpu.dimension_semantics<parallel>], iteration_bounds = array<i64: 1>, scalar_prefetch = 0 : i64, scratch_operands = 0 : i64, tpu.core_type = #tpu.core_type<tc>, window_params = [{pipeline_mode = #tpu.pipeline_mode<synchronous>, transform_indices = @transform_0, window_bounds = array<i64: 1, 256>}, {transform_indices = @transform_1, window_bounds = array<i64: 1, 256>}, {transform_indices = @transform_2, window_bounds = array<i64: 1, 256>}]} {
    %c0 = arith.constant 0 : index
    %c0_0 = arith.constant 0 : index
    %0 = vector.load %arg2[%c0, %c0_0] : memref<1x256xf32, #tpu.memory_space<vmem>>, vector<1x256xf32>
    %c0_1 = arith.constant 0 : index
    %c0_2 = arith.constant 0 : index
    %1 = vector.load %arg1[%c0_1, %c0_2] : memref<1x256xf32, #tpu.memory_space<vmem>>, vector<1x256xf32>
    %2 = arith.mulf %0, %1 : vector<1x256xf32>
    %c0_3 = arith.constant 0 : index
    %c0_4 = arith.constant 0 : index
    %3 = vector.load %arg3[%c0_3, %c0_4] : memref<1x256xf32, #tpu.memory_space<vmem>>, vector<1x256xf32>
    tpu.vector_store %arg3[%c0_3, %c0_4], %2 {strides = array<i32>} : memref<1x256xf32, #tpu.memory_space<vmem>>, vector<1x256xf32>,
    return
  }
  func.func @transform_0(%arg0: i32) -> (i32, i32) {
    %c0_i32 = arith.constant 0 : i32
    %c0_i32_0 = arith.constant 0 : i32
    %c0_i32_1 = arith.constant 0 : i32
    return %c0_i32, %c0_i32_0 : i32, i32
  }
  func.func @transform_1(%arg0: i32) -> (i32, i32) {
    %c0_i32 = arith.constant 0 : i32
    %c0_i32_0 = arith.constant 0 : i32
    return %arg0, %c0_i32 : i32, i32
  }
  func.func @transform_2(%arg0: i32) -> (i32, i32) {
    %c0_i32 = arith.constant 0 : i32
    %c0_i32_0 = arith.constant 0 : i32
    return %arg0, %c0_i32 : i32, i32
  }
}

</mosaic_0001>

<llo_original>
// kernel: tpu_custom_call.1
$region0: #{tpu_custom_call.1}
  #allocation0 [shape = 'u32[]', space=smem, size = 0x4, offset = 0x4, fixed_abs, tag = 'smem constant byte address 0x4 - core index']
  #allocation1 [shape = 'u32[144,128]{1,0:T(1,128)}', space=vmem, size = 0x12000, scoped, tag = 'internal scratch']
  %s0 = inlined_call_operand.hbm [shape: f32[1,256], index: 0, kind: input, shape index: {}]
  %s1 = inlined_call_operand.vmem [shape: f32[1,256], index: 1, kind: input, shape index: {}]
  %s2 = inlined_call_operand.hbm [shape: f32[1,256], index: 2, kind: output, shape index: {}]
  %s3 = sld [smem:[#allocation0]]
  $region22: #{tpu_custom_call.1} parent=0
    _
  %s5 = ssub.s32 1, %s3
  %s6 = scalar_select 0, %s5, %s3
  $region1: #{tpu_custom_call.1} parent=0
    #allocation2 [shape = 'u8[1024]{0}', space=vmem, size = 0x400, scoped, tag = 'input window, operand 0, single buffered']
    #allocation3 [shape = 's32[1]{0}', space=sflag, size = 0x4, scoped, tag = 'scoped memory for tpu_custom_call.1']
    #allocation4 [shape = 's32[1]{0}', space=sflag, size = 0x4, scoped, tag = 'scoped memory for tpu_custom_call.1']
    #allocation5 [shape = 'u8[1024]{0}', space=vmem, size = 0x400, scoped, tag = 'output window, operand 0, single buffered']
    %7 = vsyncpa [#allocation3], 0
    %8 = vsyncpa [#allocation4], 0
    // Predicated region
    $region2: #{tpu_custom_call.1} parent=1 // pred_check
      _
    $region3: #{tpu_custom_call.1} parent=1 // pred_check_branch
      %10 = sbr.rel (0) target = $region5
    $region4: #{tpu_custom_call.1} parent=1 // pred_region
      %s12 = ssub.s32 32, 32
      %13 = vsyncadd [#allocation3], %s12
      %s15 = sshll.u32 [#allocation2], 4
      %s16 = int_to_ptr.vmem [resolvable:$true] %s15
      %18 = dma.hbm_to_vmem [thread:$0]  %s0, 32, %s16, [#allocation3]
    $region5: #{tpu_custom_call.1} parent=1 // pred_fallthru
      _
    // Predicated region
    $region6: #{tpu_custom_call.1} parent=1 // pred_check
      _
    $region7: #{tpu_custom_call.1} parent=1 // pred_check_branch
      %20 = sbr.rel (0) target = $region9
    $region8: #{tpu_custom_call.1} parent=1 // pred_region
      _
    $region9: #{tpu_custom_call.1} parent=1 // pred_fallthru
      _
    // Predicated region
    $region10: #{tpu_custom_call.1} parent=1 // pred_check
      _
    $region11: #{tpu_custom_call.1} parent=1 // pred_check_branch
      %22 = sbr.rel (0) target = $region13
    $region12: #{tpu_custom_call.1} parent=1 // pred_region
      %23 = dma.done [#allocation3], 32
    $region13: #{tpu_custom_call.1} parent=1 // pred_fallthru
      _
    %v24 = vld [vmem:[%s1] sm:$0x3]
    %v25 = vld [vmem:[#allocation2] sm:$0x3]
    %v26 = vmul.f32 %v24, %v25
    %v27 = vlaneseq
    %vm28 = vcmp.ge.s32.totalorder %v27, 0
    %vm29 = vcmp.lt.s32.totalorder %v27, 256
    %vm30 = vmand %vm28, %vm29
    %31 = vst.msk [vmem:[#allocation5] sm:$0x3] %vm30, %v26
    // Predicated region
    $region14: #{tpu_custom_call.1} parent=1 // pred_check
      _
    $region15: #{tpu_custom_call.1} parent=1 // pred_check_branch
      %33 = sbr.rel (0) target = $region17
    $region16: #{tpu_custom_call.1} parent=1 // pred_region
      %s35 = ssub.s32 32, 32
      %36 = vsyncadd [#allocation4], %s35
      %s38 = sshll.u32 [#allocation5], 4
      %s39 = int_to_ptr.vmem [resolvable:$true] %s38
      %41 = dma.vmem_to_hbm [thread:$0]  %s39, 32, %s2, [#allocation4]
    $region17: #{tpu_custom_call.1} parent=1 // pred_fallthru
      _
    // Predicated region
    $region18: #{tpu_custom_call.1} parent=1 // pred_check
      _
    $region19: #{tpu_custom_call.1} parent=1 // pred_check_branch
      %43 = sbr.rel (0) target = $region21
    $region20: #{tpu_custom_call.1} parent=1 // pred_region
      %44 = dma.done [#allocation4], 32
    $region21: #{tpu_custom_call.1} parent=1 // pred_fallthru
      _
    %45 = vsyncpa [#allocation3], 1
    %46 = vsyncpa [#allocation4], 1

</llo_original>
